<compile_context>
chip_gen: v7x
topology: tpu7x:2x2x1
jax: 0.10.0
libtpu: 0.0.40
codegen_flags: <defaults>
</compile_context>

<pallas_src>
import functools

import jax
import jax.numpy as jnp
from jax.experimental import pallas as pl
from jax.experimental.pallas import tpu as pltpu


# ---------------------------------------------------------------------------
# Pallas kernel: fused (1x1x1 conv of x_8 branch) + branch-add + BN shift + ReLU
# Channels-first: Y[Cout, S_tile] = W0[Cout, C] @ X8[C, S_tile] + Y16 + Y32
# ---------------------------------------------------------------------------
def _fused_conv_add_relu_kernel(x8_ref, y16_ref, y32_ref, w_ref, shift_ref,
                                o_ref):
    # x8_ref : (1, C,    tile_s)   full-res x_8 tile
    # y16_ref: (1, Cout, tile_s)   upsampled partial conv of the x_16 branch
    # y32_ref: (1, Cout, tile_s)   upsampled partial conv of the x_32 branch
    # w_ref  : (Cout, C)           BN-scale-folded weight slice for x_8
    # shift  : (Cout, 1)           folded BN shift (broadcast over lanes)
    y = jnp.dot(w_ref[...], x8_ref[0], preferred_element_type=jnp.float32)
    y = y + y16_ref[0] + y32_ref[0] + shift_ref[...]
    o_ref[0] = jnp.maximum(y, 0.0).astype(o_ref.dtype)


def _pick_spatial_tile(s, live_rows, dtype_bytes=4, max_tile=4096,
                       vmem_budget_bytes=4 << 20):
    """Largest multiple-of-128 divisor of `s` (<= max_tile) whose
    double-buffered working set stays well under the scoped-VMEM budget on
    every TPU generation (v7x: 64 MiB physical / 32 MiB scoped)."""
    if s % 128 != 0:
        # TODO(synk): mask/pad the ragged tail; typical LSS voxel grids have
        # S = Dz*Dy*Dx divisible by 128, so a full-extent block is used here.
        return s
    best = 128
    t = 128
    while t <= min(s, max_tile):
        if s % t == 0 and 2 * live_rows * t * dtype_bytes <= vmem_budget_bytes:
            best = t
        t += 128
    return best


def fused_conv_add_relu_pallas(x8, y16, y32, w0, shift):
    """x8: (B, C, S), y16/y32: (B, Cout, S), w0: (Cout, C), shift: (Cout, 1)."""
    b, c, s = x8.shape
    cout = w0.shape[0]
    tile_s = _pick_spatial_tile(s, live_rows=c + 3 * cout,
                                dtype_bytes=x8.dtype.itemsize)
    grid = (b, s // tile_s)
    return pl.pallas_call(
        _fused_conv_add_relu_kernel,
        out_shape=jax.ShapeDtypeStruct((b, cout, s), x8.dtype),
        grid=grid,
        in_specs=[
            pl.BlockSpec((1, c, tile_s), lambda bi, si: (bi, 0, si)),
            pl.BlockSpec((1, cout, tile_s), lambda bi, si: (bi, 0, si)),
            pl.BlockSpec((1, cout, tile_s), lambda bi, si: (bi, 0, si)),
            pl.BlockSpec((cout, c), lambda bi, si: (0, 0)),   # resident weight
            pl.BlockSpec((cout, 1), lambda bi, si: (0, 0)),   # resident shift
        ],
        out_specs=pl.BlockSpec((1, cout, tile_s), lambda bi, si: (bi, 0, si)),
        compiler_params=pltpu.CompilerParams(
            dimension_semantics=("parallel", "parallel")),
    )(x8, y16, y32, w0, shift)


# ---------------------------------------------------------------------------
# Trilinear upsample, align_corners=True, expressed as static per-axis
# interpolation-matrix matmuls (only applied to Cout-channel partial results).
# ---------------------------------------------------------------------------
def _interp_matrix(in_size, out_size):
    """(out_size, in_size) 1-D linear interpolation matrix (align_corners)."""
    if in_size == 1:
        return jnp.ones((out_size, 1), jnp.float32)
    src = jnp.arange(out_size, dtype=jnp.float32) * (
        (in_size - 1) / (out_size - 1))
    i0 = jnp.clip(jnp.floor(src).astype(jnp.int32), 0, in_size - 2)
    w = src - i0.astype(jnp.float32)
    oh0 = jax.nn.one_hot(i0, in_size, dtype=jnp.float32)
    oh1 = jax.nn.one_hot(i0 + 1, in_size, dtype=jnp.float32)
    return (1.0 - w)[:, None] * oh0 + w[:, None] * oh1


def upsample_trilinear_ac(x, out_zyx):
    """Separable align_corners=True trilinear upsample (x: B, C, dz, dy, dx)."""
    _, _, dz, dy, dx = x.shape
    oz, oy, ox = out_zyx
    if oz != dz:
        x = jnp.einsum('Zz,bczyx->bcZyx', _interp_matrix(dz, oz), x)
    if oy != dy:
        x = jnp.einsum('Yy,bczyx->bczYx', _interp_matrix(dy, oy), x)
    if ox != dx:
        x = jnp.einsum('Xx,bczyx->bczyX', _interp_matrix(dx, ox), x)
    return x


# ---------------------------------------------------------------------------
# LSSFPN3D forward
# ---------------------------------------------------------------------------
@jax.jit
def lss_fpn3d_forward(x_8, x_16, x_32, conv_w, bn_gamma, bn_beta, bn_mean,
                      bn_var, eps=1e-5):
    b, c, dz, dy, dx = x_8.shape
    c16 = x_16.shape[1]
    cout, cin = conv_w.shape[0], conv_w.shape[1]

    # Fold BN (inference running stats) into the conv weight; split the weight
    # per branch so the channel concat never materializes.
    scale = bn_gamma / jnp.sqrt(bn_var + eps)                    # (Cout,)
    shift = (bn_beta - bn_mean * scale).reshape(cout, 1)
    w = conv_w.reshape(cout, cin) * scale[:, None]
    w0, w1, w2 = w[:, :c], w[:, c:c + c16], w[:, c + c16:]

    # 1x1x1 conv (pointwise in space) commutes with the linear upsample:
    # contract the low-res branches first, upsample only Cout channels.
    y16 = jnp.einsum('oc,bczyx->bozyx', w1, x_16)
    y32 = jnp.einsum('oc,bczyx->bozyx', w2, x_32)
    y16 = upsample_trilinear_ac(y16, (dz, dy, dx))
    y32 = upsample_trilinear_ac(y32, (dz, dy, dx))

    # NCDHW is already channels-first: flattening spatial dims is free.
    s = dz * dy * dx
    out = fused_conv_add_relu_pallas(
        x_8.reshape(b, c, s),
        y16.reshape(b, cout, s),
        y32.reshape(b, cout, s),
        w0, shift)
    return out.reshape(b, cout, dz, dy, dx)


# ---------------------------------------------------------------------------
# Independent gather+lerp reference for the upsample (mirrors nn.Upsample)
# ---------------------------------------------------------------------------
def _reference_upsample_gather(x, scale):
    def up_axis(x, axis, out_size):
        in_size = x.shape[axis]
        if in_size == 1:
            reps = [1] * x.ndim
            reps[axis] = out_size
            return jnp.tile(x, reps)
        src = jnp.arange(out_size, dtype=jnp.float32) * (
            (in_size - 1) / (out_size - 1))
        i0 = jnp.clip(jnp.floor(src).astype(jnp.int32), 0, in_size - 2)
        w = src - i0.astype(jnp.float32)
        wshape = [1] * x.ndim
        wshape[axis] = out_size
        w = w.reshape(wshape)
        return (jnp.take(x, i0, axis=axis) * (1.0 - w)
                + jnp.take(x, i0 + 1, axis=axis) * w)

    _, _, dz, dy, dx = x.shape
    x = up_axis(x, 2, dz * scale)
    x = up_axis(x, 3, dy * scale)
    x = up_axis(x, 4, dx * scale)
    return x


if __name__ == "__main__":
    key = jax.random.PRNGKey(0)
    B, C, Dz, Dy, Dx = 2, 4, 8, 16, 16
    in_ch, out_ch = 7 * C, C   # C + 2C + 4C -> C

    ks = jax.random.split(key, 8)
    x_8 = jax.random.normal(ks[0], (B, C, Dz, Dy, Dx), jnp.float32)
    x_16 = jax.random.normal(ks[1], (B, 2 * C, Dz // 2, Dy // 2, Dx // 2),
                             jnp.float32)
    x_32 = jax.random.normal(ks[2], (B, 4 * C, Dz // 4, Dy // 4, Dx // 4),
                             jnp.float32)

    # deterministic synthetic parameters (Conv3d 1x1x1 weight, BN3d params)
    conv_w = 0.1 * jax.random.normal(ks[3], (out_ch, in_ch, 1, 1, 1),
                                     jnp.float32)
    bn_gamma = 1.0 + 0.1 * jax.random.normal(ks[4], (out_ch,), jnp.float32)
    bn_beta = 0.1 * jax.random.normal(ks[5], (out_ch,), jnp.float32)
    bn_mean = 0.1 * jax.random.normal(ks[6], (out_ch,), jnp.float32)
    bn_var = jnp.abs(jax.random.normal(ks[7], (out_ch,), jnp.float32)) + 0.5

    out = lss_fpn3d_forward(x_8, x_16, x_32, conv_w, bn_gamma, bn_beta,
                            bn_mean, bn_var)
    out = jax.block_until_ready(out)
    assert out.shape == (B, out_ch, Dz, Dy, Dx), out.shape

    # Pure-JAX reference in the ORIGINAL module order:
    # upsample -> concat -> conv -> BN -> ReLU.
    x16u = _reference_upsample_gather(x_16, 2)
    x32u = _reference_upsample_gather(x_32, 4)
    xc = jnp.concatenate([x_8, x16u, x32u], axis=1)
    y = jnp.einsum("bczyx,oc->bozyx", xc, conv_w.reshape(out_ch, in_ch))
    scale = bn_gamma / jnp.sqrt(bn_var + 1e-5)
    shift = bn_beta - bn_mean * scale
    ref = jnp.maximum(y * scale[None, :, None, None, None]
                      + shift[None, :, None, None, None], 0.0)
    err = float(jnp.max(jnp.abs(out - ref)))
    assert jnp.allclose(out, ref, atol=1e-4, rtol=1e-4), err

    print("KERNEL_OK")
</pallas_src>

<mosaic_0001>
module attributes {stable_mosaic.version = 11 : i64} {
  func.func @_fused_conv_add_relu_kernel(%arg0: i32, %arg1: i32, %arg2: memref<1x4x2048xf32, #tpu.memory_space<vmem>>, %arg3: memref<1x4x2048xf32, #tpu.memory_space<vmem>>, %arg4: memref<1x4x2048xf32, #tpu.memory_space<vmem>>, %arg5: memref<4x4xf32, #tpu.memory_space<vmem>>, %arg6: memref<4x1xf32, #tpu.memory_space<vmem>>, %arg7: memref<1x4x2048xf32, #tpu.memory_space<vmem>>) attributes {dimension_semantics = [#tpu.dimension_semantics<parallel>, #tpu.dimension_semantics<parallel>], iteration_bounds = array<i64: 2, 1>, scalar_prefetch = 0 : i64, scratch_operands = 0 : i64, tpu.core_type = #tpu.core_type<tc>, window_params = [{transform_indices = @transform_0, window_bounds = array<i64: 1, 4, 2048>}, {transform_indices = @transform_1, window_bounds = array<i64: 1, 4, 2048>}, {transform_indices = @transform_2, window_bounds = array<i64: 1, 4, 2048>}, {pipeline_mode = #tpu.pipeline_mode<synchronous>, transform_indices = @transform_3, window_bounds = array<i64: 4, 4>}, {pipeline_mode = #tpu.pipeline_mode<synchronous>, transform_indices = @transform_4, window_bounds = array<i64: 4, 1>}, {transform_indices = @transform_5, window_bounds = array<i64: 1, 4, 2048>}]} {
    %c0 = arith.constant 0 : index
    %c0_0 = arith.constant 0 : index
    %0 = vector.load %arg5[%c0, %c0_0] : memref<4x4xf32, #tpu.memory_space<vmem>>, vector<4x4xf32>
    %c0_1 = arith.constant 0 : index
    %c0_2 = arith.constant 0 : index
    %c0_3 = arith.constant 0 : index
    %1 = vector.load %arg2[%c0_1, %c0_2, %c0_3] : memref<1x4x2048xf32, #tpu.memory_space<vmem>>, vector<1x4x2048xf32>
    %2 = vector.shape_cast %1 : vector<1x4x2048xf32> to vector<4x2048xf32>
    %cst = arith.constant dense<0.000000e+00> : vector<4x2048xf32>
    %3 = tpu.matmul %0, %2, %cst {dimension_numbers = #tpu.dot_dimension_numbers<[1], [0], [0], [1], [0, 0, 1, 1], [], []>} : vector<4x4xf32>, vector<4x2048xf32>, vector<4x2048xf32> -> vector<4x2048xf32>
    %c0_4 = arith.constant 0 : index
    %c0_5 = arith.constant 0 : index
    %c0_6 = arith.constant 0 : index
    %4 = vector.load %arg3[%c0_4, %c0_5, %c0_6] : memref<1x4x2048xf32, #tpu.memory_space<vmem>>, vector<1x4x2048xf32>
    %5 = vector.shape_cast %4 : vector<1x4x2048xf32> to vector<4x2048xf32>
    %6 = arith.addf %3, %5 : vector<4x2048xf32>
    %c0_7 = arith.constant 0 : index
    %c0_8 = arith.constant 0 : index
    %c0_9 = arith.constant 0 : index
    %7 = vector.load %arg4[%c0_7, %c0_8, %c0_9] : memref<1x4x2048xf32, #tpu.memory_space<vmem>>, vector<1x4x2048xf32>
    %8 = vector.shape_cast %7 : vector<1x4x2048xf32> to vector<4x2048xf32>
    %9 = arith.addf %6, %8 : vector<4x2048xf32>
    %c0_10 = arith.constant 0 : index
    %c0_11 = arith.constant 0 : index
    %10 = vector.load %arg6[%c0_10, %c0_11] : memref<4x1xf32, #tpu.memory_space<vmem>>, vector<4x1xf32>
    %11 = vector.broadcast %10 : vector<4x1xf32> to vector<4x2048xf32>
    %12 = arith.addf %9, %11 : vector<4x2048xf32>
    %cst_12 = arith.constant 0.000000e+00 : f32
    %13 = vector.broadcast %cst_12 : f32 to vector<4x2048xf32>
    %14 = arith.maximumf %12, %13 : vector<4x2048xf32>
    %c0_13 = arith.constant 0 : index
    %c0_14 = arith.constant 0 : index
    %c0_15 = arith.constant 0 : index
    %15 = vector.load %arg7[%c0_13, %c0_14, %c0_15] : memref<1x4x2048xf32, #tpu.memory_space<vmem>>, vector<1x4x2048xf32>
    %16 = vector.shape_cast %15 : vector<1x4x2048xf32> to vector<4x2048xf32>
    %17 = vector.shape_cast %14 : vector<4x2048xf32> to vector<1x4x2048xf32>
    tpu.vector_store %arg7[%c0_13, %c0_14, %c0_15], %17 {strides = array<i32>} : memref<1x4x2048xf32, #tpu.memory_space<vmem>>, vector<1x4x2048xf32>,
    return
  }
  func.func @transform_0(%arg0: i32, %arg1: i32) -> (i32, i32, i32) {
    %c0_i32 = arith.constant 0 : i32
    %c0_i32_0 = arith.constant 0 : i32
    return %arg0, %c0_i32, %arg1 : i32, i32, i32
  }
  func.func @transform_1(%arg0: i32, %arg1: i32) -> (i32, i32, i32) {
    %c0_i32 = arith.constant 0 : i32
    %c0_i32_0 = arith.constant 0 : i32
    return %arg0, %c0_i32, %arg1 : i32, i32, i32
  }
  func.func @transform_2(%arg0: i32, %arg1: i32) -> (i32, i32, i32) {
    %c0_i32 = arith.constant 0 : i32
    %c0_i32_0 = arith.constant 0 : i32
    return %arg0, %c0_i32, %arg1 : i32, i32, i32
  }
  func.func @transform_3(%arg0: i32, %arg1: i32) -> (i32, i32) {
    %c0_i32 = arith.constant 0 : i32
    %c0_i32_0 = arith.constant 0 : i32
    %c0_i32_1 = arith.constant 0 : i32
    return %c0_i32, %c0_i32_0 : i32, i32
  }
  func.func @transform_4(%arg0: i32, %arg1: i32) -> (i32, i32) {
    %c0_i32 = arith.constant 0 : i32
    %c0_i32_0 = arith.constant 0 : i32
    %c0_i32_1 = arith.constant 0 : i32
    return %c0_i32, %c0_i32_0 : i32, i32
  }
  func.func @transform_5(%arg0: i32, %arg1: i32) -> (i32, i32, i32) {
    %c0_i32 = arith.constant 0 : i32
    %c0_i32_0 = arith.constant 0 : i32
    return %arg0, %c0_i32, %arg1 : i32, i32, i32
  }
}

</mosaic_0001>

<llo_original>
// kernel: lss_fpn3d_forward.1
$region0: #{lss_fpn3d_forward.1}
  #allocation0 [shape = 'u32[]', space=smem, size = 0x4, offset = 0x4, fixed_abs, tag = 'smem constant byte address 0x4 - core index']
  #allocation1 [shape = 'u32[144,128]{1,0:T(1,128)}', space=vmem, size = 0x12000, scoped, tag = 'internal scratch']
  %s0 = inlined_call_operand.vmem [shape: f32[2,4,2048], index: 0, kind: input, shape index: {}]
  %s1 = inlined_call_operand.vmem [shape: f32[2,4,2048], index: 1, kind: input, shape index: {}]
  %s2 = inlined_call_operand.vmem [shape: f32[2,4,2048], index: 2, kind: input, shape index: {}]
  %s3 = inlined_call_operand.vmem [shape: f32[4,4], index: 3, kind: input, shape index: {}]
  %s4 = inlined_call_operand.vmem [shape: f32[4,1], index: 4, kind: input, shape index: {}]
  %s5 = inlined_call_operand.vmem [shape: f32[2,4,2048], index: 5, kind: output, shape index: {}]
  %s6 = sld [smem:[#allocation0]]
  $region53: #{lss_fpn3d_forward.1} parent=0
    _
  %s8 = ssub.s32 1, %s6
  %s9 = scalar_select 0, %s8, %s6
  loop: start=0, step=1, limit=4
  $region2: #{lss_fpn3d_forward.1} parent=0 // loop_pre_header
    _
  $region3: #{lss_fpn3d_forward.1} parent=0 // loop_header
    %s11 = sphi 0, %s15
    %p12 = scmp.ge.s32.totalorder %s11, 4
    %s18 = sphi 0, %s30
    %s19 = sphi 0, %s26
    %s20 = sphi 0, %s18
    %s21 = sphi 0, %s19
    %s22 = sphi 0, %s20
    %s23 = sphi 0, %s21
    %s35 = sphi 0, %s37
    %s38 = sphi 0, %s35
    %s39 = sphi 0, %s38
    %s55 = sphi 0, %s39
    %s63 = sphi 0, %s65
    %s66 = sphi 0, %s63
    %s67 = sphi 0, %s66
    %s83 = sphi 0, %s67
    %s91 = sphi 0, %s93
    %s94 = sphi 0, %s91
    %s95 = sphi 0, %s94
    %s111 = sphi 0, %s95
    %s115 = sphi 0, %s115
    %s117 = sphi 0, %s115
    %s118 = sphi 0, %s117
    %s132 = sphi 0, %s118
    %s136 = sphi 0, %s136
    %s138 = sphi 0, %s136
    %s139 = sphi 0, %s138
    %s153 = sphi 0, %s139
    %s161 = sphi 0, %s163
    %s164 = sphi 0, %s161
    %s165 = sphi 0, %s164
    %s181 = sphi 0, %s165
  $region4: #{lss_fpn3d_forward.1} parent=0 // loop_header_branch
    %14 = sbr.rel (%p12) target = $region8
  $region5: #{lss_fpn3d_forward.1} parent=0 // loop_body
    %s16 = ssub.s32 %s11, 1
    %s17 = ssub.s32 %s11, 2
    %s24 = sadd.s32 1, %s19
    %p25 = scmp.ge.s32.totalorder %s24, 1
    %s26 = scalar_select %p25, 0, %s24
    %s27 = sadd.s32 1, %s18
    %s28 = scalar_select %p25, %s27, %s18
    %p29 = scmp.ge.s32.totalorder %s28, 2
    %s30 = scalar_select %p29, 0, %s28
    %s31 = ssub.s32 %s18, %s30
    %s32 = ssub.s32 %s19, %s26
    %s33 = sor.u32 %s31, %s32
    %p34 = scmp.eq.s32.totalorder %s33, 0
    %s36 = sadd.s32 %s35, 1
    %s37 = scalar_select %p34, %s35, %s36
    %p40 = pneg %p34
    %p41 = scmp.eq.s32.totalorder %s11, 1
    %p42 = por %p40, %p41
    %p43 = scmp.ne.s32.totalorder %s35, %s38
    %p44 = scmp.eq.s32.totalorder %s11, 0
    %p45 = por %p43, %p44
    %p46 = scmp.ne.s32.totalorder %s35, %s38
    %p47 = scmp.eq.s32.totalorder %s16, 1
    %p48 = por %p46, %p47
    %p49 = scmp.ne.s32.totalorder %s38, %s39
    %p50 = scmp.eq.s32.totalorder %s16, 0
    %p51 = por %p49, %p50
    %p52 = scmp.ne.s32.totalorder %s38, %s39
    %p53 = scmp.eq.s32.totalorder %s17, 1
    %p54 = por %p52, %p53
    %p56 = scmp.ne.s32.totalorder %s39, %s55
    %p57 = scmp.eq.s32.totalorder %s17, 0
    %p58 = por %p56, %p57
    %s59 = ssub.s32 %s18, %s30
    %s60 = ssub.s32 %s19, %s26
    %s61 = sor.u32 %s59, %s60
    %p62 = scmp.eq.s32.totalorder %s61, 0
    %s64 = sadd.s32 %s63, 1
    %s65 = scalar_select %p62, %s63, %s64
    %p68 = pneg %p62
    %p69 = scmp.eq.s32.totalorder %s11, 1
    %p70 = por %p68, %p69
    %p71 = scmp.ne.s32.totalorder %s63, %s66
    %p72 = scmp.eq.s32.totalorder %s11, 0
    %p73 = por %p71, %p72
    %p74 = scmp.ne.s32.totalorder %s63, %s66
    %p75 = scmp.eq.s32.totalorder %s16, 1
    %p76 = por %p74, %p75
    %p77 = scmp.ne.s32.totalorder %s66, %s67
    %p78 = scmp.eq.s32.totalorder %s16, 0
    %p79 = por %p77, %p78
    %p80 = scmp.ne.s32.totalorder %s66, %s67
    %p81 = scmp.eq.s32.totalorder %s17, 1
    %p82 = por %p80, %p81
    %p84 = scmp.ne.s32.totalorder %s67, %s83
    %p85 = scmp.eq.s32.totalorder %s17, 0
    %p86 = por %p84, %p85
    %s87 = ssub.s32 %s18, %s30
    %s88 = ssub.s32 %s19, %s26
    %s89 = sor.u32 %s87, %s88
    %p90 = scmp.eq.s32.totalorder %s89, 0
    %s92 = sadd.s32 %s91, 1
    %s93 = scalar_select %p90, %s91, %s92
    %p96 = pneg %p90
    %p97 = scmp.eq.s32.totalorder %s11, 1
    %p98 = por %p96, %p97
    %p99 = scmp.ne.s32.totalorder %s91, %s94
    %p100 = scmp.eq.s32.totalorder %s11, 0
    %p101 = por %p99, %p100
    %p102 = scmp.ne.s32.totalorder %s91, %s94
    %p103 = scmp.eq.s32.totalorder %s16, 1
    %p104 = por %p102, %p103
    %p105 = scmp.ne.s32.totalorder %s94, %s95
    %p106 = scmp.eq.s32.totalorder %s16, 0
    %p107 = por %p105, %p106
    %p108 = scmp.ne.s32.totalorder %s94, %s95
    %p109 = scmp.eq.s32.totalorder %s17, 1
    %p110 = por %p108, %p109
    %p112 = scmp.ne.s32.totalorder %s95, %s111
    %p113 = scmp.eq.s32.totalorder %s17, 0
    %p114 = por %p112, %p113
    %s116 = sadd.s32 %s115, 1
    %p119 = scmp.eq.s32.totalorder %s11, 1
    %p120 = scmp.ne.s32.totalorder %s115, %s117
    %p121 = scmp.eq.s32.totalorder %s11, 0
    %p122 = por %p120, %p121
    %p123 = scmp.ne.s32.totalorder %s115, %s117
    %p124 = scmp.eq.s32.totalorder %s16, 1
    %p125 = por %p123, %p124
    %p126 = scmp.ne.s32.totalorder %s117, %s118
    %p127 = scmp.eq.s32.totalorder %s16, 0
    %p128 = por %p126, %p127
    %p129 = scmp.ne.s32.totalorder %s117, %s118
    %p130 = scmp.eq.s32.totalorder %s17, 1
    %p131 = por %p129, %p130
    %p133 = scmp.ne.s32.totalorder %s118, %s132
    %p134 = scmp.eq.s32.totalorder %s17, 0
    %p135 = por %p133, %p134
    %s137 = sadd.s32 %s136, 1
    %p140 = scmp.eq.s32.totalorder %s11, 1
    %p141 = scmp.ne.s32.totalorder %s136, %s138
    %p142 = scmp.eq.s32.totalorder %s11, 0
    %p143 = por %p141, %p142
    %p144 = scmp.ne.s32.totalorder %s136, %s138
    %p145 = scmp.eq.s32.totalorder %s16, 1
    %p146 = por %p144, %p145
    %p147 = scmp.ne.s32.totalorder %s138, %s139
    %p148 = scmp.eq.s32.totalorder %s16, 0
    %p149 = por %p147, %p148
    %p150 = scmp.ne.s32.totalorder %s138, %s139
    %p151 = scmp.eq.s32.totalorder %s17, 1
    %p152 = por %p150, %p151
    %p154 = scmp.ne.s32.totalorder %s139, %s153
    %p155 = scmp.eq.s32.totalorder %s17, 0
    %p156 = por %p154, %p155
    %s157 = ssub.s32 %s18, %s30
    %s158 = ssub.s32 %s19, %s26
    %s159 = sor.u32 %s157, %s158
    %p160 = scmp.eq.s32.totalorder %s159, 0
    %s162 = sadd.s32 %s161, 1
    %s163 = scalar_select %p160, %s161, %s162
    %p166 = pneg %p160
    %p167 = scmp.eq.s32.totalorder %s11, 1
    %p168 = por %p166, %p167
    %p169 = scmp.ne.s32.totalorder %s161, %s164
    %p170 = scmp.eq.s32.totalorder %s11, 0
    %p171 = por %p169, %p170
    %p172 = scmp.ne.s32.totalorder %s161, %s164
    %p173 = scmp.eq.s32.totalorder %s16, 1
    %p174 = por %p172, %p173
    %p175 = scmp.ne.s32.totalorder %s164, %s165
    %p176 = scmp.eq.s32.totalorder %s16, 0
    %p177 = por %p175, %p176
    %p178 = scmp.ne.s32.totalorder %s164, %s165
    %p179 = scmp.eq.s32.totalorder %s17, 1
    %p180 = por %p178, %p179
    %p182 = scmp.ne.s32.totalorder %s165, %s181
    %p183 = scmp.eq.s32.totalorder %s17, 0
    %p184 = por %p182, %p183
    %p185 = scmp.le.s32.totalorder 1, %s11
    %p186 = scmp.lt.s32.totalorder %s11, 3
    %p187 = pnand %p185, %p186
    %p188 = pneg %p187
    // Predicated region
    $region9: #{lss_fpn3d_forward.1} parent=5 // pred_check
      _
    $region10: #{lss_fpn3d_forward.1} parent=5 // pred_check_branch
      %190 = sbr.rel (%p187) target = $region12
    $region11: #{lss_fpn3d_forward.1} parent=5 // pred_region
      %s191 = ssub.s32 %s11, 1
      // Predicated region
      $region13: #{lss_fpn3d_forward.1} parent=11 // pred_check
        %p192 = pneg %p128
      $region14: #{lss_fpn3d_forward.1} parent=11 // pred_check_branch
        %194 = sbr.rel (%p192) target = $region16
      $region15: #{lss_fpn3d_forward.1} parent=11 // pred_region
        _
      $region16: #{lss_fpn3d_forward.1} parent=11 // pred_fallthru
        _
      // Predicated region
      $region17: #{lss_fpn3d_forward.1} parent=11 // pred_check
        %p195 = pneg %p149
      $region18: #{lss_fpn3d_forward.1} parent=11 // pred_check_branch
        %197 = sbr.rel (%p195) target = $region20
      $region19: #{lss_fpn3d_forward.1} parent=11 // pred_region
        _
      $region20: #{lss_fpn3d_forward.1} parent=11 // pred_fallthru
        _
    $region12: #{lss_fpn3d_forward.1} parent=5 // pred_fallthru
      _
    %p198 = scmp.lt.s32.totalorder %s11, 2
    // Predicated region
    $region21: #{lss_fpn3d_forward.1} parent=5 // pred_check
      %p199 = pneg %p198
    $region22: #{lss_fpn3d_forward.1} parent=5 // pred_check_branch
      %201 = sbr.rel (%p199) target = $region24
    $region23: #{lss_fpn3d_forward.1} parent=5 // pred_region
      // Predicated region
      $region25: #{lss_fpn3d_forward.1} parent=23 // pred_check
        %p202 = pneg %p45
      $region26: #{lss_fpn3d_forward.1} parent=23 // pred_check_branch
        %204 = sbr.rel (%p202) target = $region28
      $region27: #{lss_fpn3d_forward.1} parent=23 // pred_region
        %s205 = smul.u32 16, %s19
        %p206 = scmp.lt.s32.totalorder %s18, 1
        %s207 = scalar_select %p206, %s18, 1
        %p208 = scmp.lt.s32.totalorder %s205, 15
        %s209 = scalar_select %p208, %s205, 15
        %s210 = smul.addr %s207, 16
        %s211 = sadd.s32 %s209, %s210
        %s212 = smul.addr %s211, 4
        %s213 = scalar_lea.vmem %s0, %s212
        %s214 = smul.u32 16, %s19
      $region28: #{lss_fpn3d_forward.1} parent=23 // pred_fallthru
        _
      // Predicated region
      $region29: #{lss_fpn3d_forward.1} parent=23 // pred_check
        %p215 = pneg %p73
      $region30: #{lss_fpn3d_forward.1} parent=23 // pred_check_branch
        %217 = sbr.rel (%p215) target = $region32
      $region31: #{lss_fpn3d_forward.1} parent=23 // pred_region
        %s218 = smul.u32 16, %s19
        %p219 = scmp.lt.s32.totalorder %s18, 1
        %s220 = scalar_select %p219, %s18, 1
        %p221 = scmp.lt.s32.totalorder %s218, 15
        %s222 = scalar_select %p221, %s218, 15
        %s223 = smul.addr %s220, 16
        %s224 = sadd.s32 %s222, %s223
        %s225 = smul.addr %s224, 4
        %s226 = scalar_lea.vmem %s1, %s225
        %s227 = smul.u32 16, %s19
      $region32: #{lss_fpn3d_forward.1} parent=23 // pred_fallthru
        _
      // Predicated region
      $region33: #{lss_fpn3d_forward.1} parent=23 // pred_check
        %p228 = pneg %p101
      $region34: #{lss_fpn3d_forward.1} parent=23 // pred_check_branch
        %230 = sbr.rel (%p228) target = $region36
      $region35: #{lss_fpn3d_forward.1} parent=23 // pred_region
        %s231 = smul.u32 16, %s19
        %p232 = scmp.lt.s32.totalorder %s18, 1
        %s233 = scalar_select %p232, %s18, 1
        %p234 = scmp.lt.s32.totalorder %s231, 15
        %s235 = scalar_select %p234, %s231, 15
        %s236 = smul.addr %s233, 16
        %s237 = sadd.s32 %s235, %s236
        %s238 = smul.addr %s237, 4
        %s239 = scalar_lea.vmem %s2, %s238
        %s240 = smul.u32 16, %s19
      $region36: #{lss_fpn3d_forward.1} parent=23 // pred_fallthru
        _
    $region24: #{lss_fpn3d_forward.1} parent=5 // pred_fallthru
      _
    %p241 = scmp.le.s32.totalorder 1, %s11
    %p242 = scmp.lt.s32.totalorder %s11, 3
    %p243 = pnand %p241, %p242
    %p244 = pneg %p243
    // Predicated region
    $region37: #{lss_fpn3d_forward.1} parent=5 // pred_check
      _
    $region38: #{lss_fpn3d_forward.1} parent=5 // pred_check_branch
      %246 = sbr.rel (%p243) target = $region40
    $region39: #{lss_fpn3d_forward.1} parent=5 // pred_region
      %s247 = ssub.s32 %s11, 1
      %s248 = smul.u32 16, %s21
      %p249 = scmp.lt.s32.totalorder %s20, 1
      %s250 = scalar_select %p249, %s20, 1
      %p251 = scmp.lt.s32.totalorder %s248, 15
      %s252 = scalar_select %p251, %s248, 15
      %s253 = smul.addr %s250, 16
      %s254 = sadd.s32 %s252, %s253
      %s255 = smul.addr %s254, 4
      %s256 = scalar_lea.vmem %s0, %s255
      %p257 = pneg %p51
      %p258 = pneg %p48
      %s259 = smul.u32 16, %s21
      %p260 = scmp.lt.s32.totalorder %s20, 1
      %s261 = scalar_select %p260, %s20, 1
      %p262 = scmp.lt.s32.totalorder %s259, 15
      %s263 = scalar_select %p262, %s259, 15
      %s264 = smul.addr %s261, 16
      %s265 = sadd.s32 %s263, %s264
      %s266 = smul.addr %s265, 4
      %s267 = scalar_lea.vmem %s1, %s266
      %p268 = pneg %p79
      %p269 = pneg %p76
      %s270 = smul.u32 16, %s21
      %p271 = scmp.lt.s32.totalorder %s20, 1
      %s272 = scalar_select %p271, %s20, 1
      %p273 = scmp.lt.s32.totalorder %s270, 15
      %s274 = scalar_select %p273, %s270, 15
      %s275 = smul.addr %s272, 16
      %s276 = sadd.s32 %s274, %s275
      %s277 = smul.addr %s276, 4
      %s278 = scalar_lea.vmem %s2, %s277
      %p279 = pneg %p107
      %p280 = pneg %p104
      %p281 = pneg %p128
      %p282 = pneg %p125
      %p283 = pneg %p149
      %p284 = pneg %p146
      %p285 = pneg %p177
      %p286 = pneg %p174
      %s287 = smul.u32 16, %s21
      %p288 = scmp.lt.s32.totalorder %s20, 1
      %s289 = scalar_select %p288, %s20, 1
      %p290 = scmp.lt.s32.totalorder %s287, 15
      %s291 = scalar_select %p290, %s287, 15
      %s292 = smul.addr %s289, 16
      %s293 = sadd.s32 %s291, %s292
      %s294 = smul.addr %s293, 4
      %s295 = scalar_lea.vmem %s5, %s294
      %s296 = smul.u32 16, %s21
      %p297 = scmp.lt.s32.totalorder %s20, 1
      %s298 = scalar_select %p297, %s20, 1
      %p299 = scmp.lt.s32.totalorder %s296, 15
      %s300 = scalar_select %p299, %s296, 15
      %s301 = smul.addr %s298, 16
      %s302 = sadd.s32 %s300, %s301
      %s303 = smul.addr %s302, 4
      %s304 = scalar_lea.vmem %s0, %s303
      %s305 = smul.u32 16, %s21
      %s306 = smul.u32 16, %s21
      %p307 = scmp.lt.s32.totalorder %s20, 1
      %s308 = scalar_select %p307, %s20, 1
      %p309 = scmp.lt.s32.totalorder %s306, 15
      %s310 = scalar_select %p309, %s306, 15
      %s311 = smul.addr %s308, 16
      %s312 = sadd.s32 %s310, %s311
      %s313 = smul.addr %s312, 4
      %s314 = scalar_lea.vmem %s1, %s313
      %s315 = smul.u32 16, %s21
      %s316 = smul.u32 16, %s21
      %p317 = scmp.lt.s32.totalorder %s20, 1
      %s318 = scalar_select %p317, %s20, 1
      %p319 = scmp.lt.s32.totalorder %s316, 15
      %s320 = scalar_select %p319, %s316, 15
      %s321 = smul.addr %s318, 16
      %s322 = sadd.s32 %s320, %s321
      %s323 = smul.addr %s322, 4
      %s324 = scalar_lea.vmem %s2, %s323
      %s325 = smul.u32 16, %s21
      %s326 = smul.u32 16, %s21
      %p327 = scmp.lt.s32.totalorder %s20, 1
      %s328 = scalar_select %p327, %s20, 1
      %p329 = scmp.lt.s32.totalorder %s326, 15
      %s330 = scalar_select %p329, %s326, 15
      %s331 = smul.addr %s328, 16
      %s332 = sadd.s32 %s330, %s331
      %s333 = smul.addr %s332, 4
      %s334 = scalar_lea.vmem %s5, %s333
      %s335 = smul.u32 16, %s21
      %v336 = vld [vmem:[%s3] sm:$0xf]
      %v337 = vld [vmem:[%s304] sm:$0xff]
      %v338 = vld [vmem:[%s304 + $0x8] sm:$0xff]
      %v339 = vld [vmem:[%s304 + $0x10] sm:$0xff]
      %v340 = vld [vmem:[%s304 + $0x18] sm:$0xff]
      %v341 = vld [vmem:[%s304 + $0x20] sm:$0xff]
      %v342 = vld [vmem:[%s304 + $0x28] sm:$0xff]
      %v343 = vld [vmem:[%s304 + $0x30] sm:$0xff]
      %v344 = vld [vmem:[%s304 + $0x38] sm:$0xff]
      %v345 = vld [vmem:[%s314] sm:$0xff]
      %v346 = vld [vmem:[%s314 + $0x8] sm:$0xff]
      %v347 = vld [vmem:[%s314 + $0x10] sm:$0xff]
      %v348 = vld [vmem:[%s314 + $0x18] sm:$0xff]
      %v349 = vld [vmem:[%s314 + $0x20] sm:$0xff]
      %v350 = vld [vmem:[%s314 + $0x28] sm:$0xff]
      %v351 = vld [vmem:[%s314 + $0x30] sm:$0xff]
      %v352 = vld [vmem:[%s314 + $0x38] sm:$0xff]
      %v361 = vcombine.high %v337, %v337
      %v362 = vcombine.high %v338, %v338
      %v363 = vcombine.high %v339, %v339
      %v364 = vcombine.high %v340, %v340
      %v365 = vcombine.high %v341, %v341
      %v366 = vcombine.high %v342, %v342
      %v367 = vcombine.high %v343, %v343
      %v368 = vcombine.high %v344, %v344
      %v377 = vcombine.high %v345, %v345
      %v378 = vcombine.high %v346, %v346
      %v379 = vcombine.high %v347, %v347
      %v380 = vcombine.high %v348, %v348
      %v381 = vcombine.high %v349, %v349
      %v382 = vcombine.high %v350, %v350
      %v383 = vcombine.high %v351, %v351
      %v384 = vcombine.high %v352, %v352
      %vm393 = vcmask 31744
      %v395 = vsel %vm393, %v336, 0
      %vm397 = vcmask 1043456
      %v398 = vsel %vm397, %v337, 0
      %v400 = vsel %vm397, %v361, 0
      %v402 = vsel %vm397, %v338, 0
      %v404 = vsel %vm397, %v362, 0
      %v406 = vsel %vm397, %v339, 0
      %v408 = vsel %vm397, %v363, 0
      %v410 = vsel %vm397, %v340, 0
      %v412 = vsel %vm397, %v364, 0
      %v414 = vsel %vm397, %v341, 0
      %v416 = vsel %vm397, %v365, 0
      %v418 = vsel %vm397, %v342, 0
      %v420 = vsel %vm397, %v366, 0
      %v422 = vsel %vm397, %v343, 0
      %v424 = vsel %vm397, %v367, 0
      %v426 = vsel %vm397, %v344, 0
      %v428 = vsel %vm397, %v368, 0
      %430 = vmatprep.subr.mxu0 %v400
      %431 = vmatpush1.msra.mxu0 %v398
      %432 = vmatprep.subr.mxu0 0.0
      %433 = vmatpush1.msra.mxu0 0.0
      %434 = vmatprep.subr.mxu0 0.0
      %435 = vmatpush1.msra.mxu0 0.0
      %436 = vmatprep.subr.mxu0 0.0
      %437 = vmatpush1.msra.mxu0 0.0
      %438 = vmatprep.subr.mxu0 0.0
      %439 = vmatpush1.msra.mxu0 0.0
      %440 = vmatprep.subr.mxu0 0.0
      %441 = vmatpush1.msra.mxu0 0.0
      %442 = vmatprep.subr.mxu0 0.0
      %443 = vmatpush1.msra.mxu0 0.0
      %444 = vmatprep.subr.mxu0 0.0
      %445 = vmatpush1.msra.mxu0 0.0
      %446 = vmatprep.subr.mxu0 0.0
      %447 = vmatpush1.msra.mxu0 0.0
      %448 = vmatprep.subr.mxu0 0.0
      %449 = vmatpush1.msra.mxu0 0.0
      %450 = vmatprep.subr.mxu0 0.0
      %451 = vmatpush1.msra.mxu0 0.0
      %452 = vmatprep.subr.mxu0 0.0
      %453 = vmatpush1.msra.mxu0 0.0
      %454 = vmatprep.subr.mxu0 0.0
      %455 = vmatpush1.msra.mxu0 0.0
      %456 = vmatprep.subr.mxu0 0.0
      %457 = vmatpush1.msra.mxu0 0.0
      %458 = vmatprep.subr.mxu0 0.0
      %459 = vmatpush1.msra.mxu0 0.0
      %460 = vmatprep.subr.mxu0 0.0
      %461 = vmatpush1.msra.mxu0 0.0
      %462 = vmatprep.subr.mxu0 0.0
      %463 = vmatpush1.msra.mxu0 0.0
      %464 = vmatprep.subr.mxu0 0.0
      %465 = vmatpush1.msra.mxu0 0.0
      %466 = vmatprep.subr.mxu0 0.0
      %467 = vmatpush1.msra.mxu0 0.0
      %468 = vmatprep.subr.mxu0 0.0
      %469 = vmatpush1.msra.mxu0 0.0
      %470 = vmatprep.subr.mxu0 0.0
      %471 = vmatpush1.msra.mxu0 0.0
      %472 = vmatprep.subr.mxu0 0.0
      %473 = vmatpush1.msra.mxu0 0.0
      %474 = vmatprep.subr.mxu0 0.0
      %475 = vmatpush1.msra.mxu0 0.0
      %476 = vmatprep.subr.mxu0 0.0
      %477 = vmatpush1.msra.mxu0 0.0
      %478 = vmatprep.subr.mxu0 0.0
      %479 = vmatpush1.msra.mxu0 0.0
      %480 = vmatprep.subr.mxu0 0.0
      %481 = vmatpush1.msra.mxu0 0.0
      %482 = vmatprep.subr.mxu0 0.0
      %483 = vmatpush1.msra.mxu0 0.0
      %484 = vmatprep.subr.mxu0 0.0
      %485 = vmatpush1.msra.mxu0 0.0
      %486 = vmatprep.subr.mxu0 0.0
      %487 = vmatpush1.msra.mxu0 0.0
      %488 = vmatprep.subr.mxu0 0.0
      %489 = vmatpush1.msra.mxu0 0.0
      %490 = vmatprep.subr.mxu0 0.0
      %491 = vmatpush1.msra.mxu0 0.0
      %492 = vmatprep.subr.mxu0 0.0
      %493 = vmatpush1.msra.mxu0 0.0
      %494 = vmatprep.mubr.f32.mxu0 0.0
      %495 = vmatmul.mubr.f32.gmra.mrb[0].mxu0 %v395
      %v496 = vpop.f32.mrb[0].mxu0
      %v497 = vadd.f32 %v345, %v496
      %v498 = vpop.f32.mrb[0].mxu0
      %v499 = vadd.f32 %v377, %v498
      %500 = vdwg.mxu0
      %501 = vmatprep.subr.mxu0 %v404
      %502 = vmatpush1.msra.mxu0 %v402
      %503 = vmatprep.subr.mxu0 0.0
      %504 = vmatpush1.msra.mxu0 0.0
      %505 = vmatprep.subr.mxu0 0.0
      %506 = vmatpush1.msra.mxu0 0.0
      %507 = vmatprep.subr.mxu0 0.0
      %508 = vmatpush1.msra.mxu0 0.0
      %509 = vmatprep.subr.mxu0 0.0
      %510 = vmatpush1.msra.mxu0 0.0
      %511 = vmatprep.subr.mxu0 0.0
      %512 = vmatpush1.msra.mxu0 0.0
      %513 = vmatprep.subr.mxu0 0.0
      %514 = vmatpush1.msra.mxu0 0.0
      %515 = vmatprep.subr.mxu0 0.0
      %516 = vmatpush1.msra.mxu0 0.0
      %517 = vmatprep.subr.mxu0 0.0
      %518 = vmatpush1.msra.mxu0 0.0
      %519 = vmatprep.subr.mxu0 0.0
      %520 = vmatpush1.msra.mxu0 0.0
      %521 = vmatprep.subr.mxu0 0.0
      %522 = vmatpush1.msra.mxu0 0.0
      %523 = vmatprep.subr.mxu0 0.0
      %524 = vmatpush1.msra.mxu0 0.0
      %525 = vmatprep.subr.mxu0 0.0
      %526 = vmatpush1.msra.mxu0 0.0
      %527 = vmatprep.subr.mxu0 0.0
      %528 = vmatpush1.msra.mxu0 0.0
      %529 = vmatprep.subr.mxu0 0.0
      %530 = vmatpush1.msra.mxu0 0.0
      %531 = vmatprep.subr.mxu0 0.0
      %532 = vmatpush1.msra.mxu0 0.0
      %533 = vmatprep.subr.mxu0 0.0
      %534 = vmatpush1.msra.mxu0 0.0
      %535 = vmatprep.subr.mxu0 0.0
      %536 = vmatpush1.msra.mxu0 0.0
      %537 = vmatprep.subr.mxu0 0.0
      %538 = vmatpush1.msra.mxu0 0.0
      %539 = vmatprep.subr.mxu0 0.0
      %540 = vmatpush1.msra.mxu0 0.0
      %541 = vmatprep.subr.mxu0 0.0
      %542 = vmatpush1.msra.mxu0 0.0
      %543 = vmatprep.subr.mxu0 0.0
      %544 = vmatpush1.msra.mxu0 0.0
      %545 = vmatprep.subr.mxu0 0.0
      %546 = vmatpush1.msra.mxu0 0.0
      %547 = vmatprep.subr.mxu0 0.0
      %548 = vmatpush1.msra.mxu0 0.0
      %549 = vmatprep.subr.mxu0 0.0
      %550 = vmatpush1.msra.mxu0 0.0
      %551 = vmatprep.subr.mxu0 0.0
      %552 = vmatpush1.msra.mxu0 0.0
      %553 = vmatprep.subr.mxu0 0.0
      %554 = vmatpush1.msra.mxu0 0.0
      %555 = vmatprep.subr.mxu0 0.0
      %556 = vmatpush1.msra.mxu0 0.0
      %557 = vmatprep.subr.mxu0 0.0
      %558 = vmatpush1.msra.mxu0 0.0
      %559 = vmatprep.subr.mxu0 0.0
      %560 = vmatpush1.msra.mxu0 0.0
      %561 = vmatprep.subr.mxu0 0.0
      %562 = vmatpush1.msra.mxu0 0.0
      %563 = vmatprep.subr.mxu0 0.0
      %564 = vmatpush1.msra.mxu0 0.0
      %565 = vmatprep.mubr.f32.mxu0 0.0
      %566 = vmatmul.mubr.f32.gmra.mrb[0].mxu0 %v395
      %v567 = vpop.f32.mrb[0].mxu0
      %v568 = vadd.f32 %v346, %v567
      %v569 = vpop.f32.mrb[0].mxu0
      %v570 = vadd.f32 %v378, %v569
      %571 = vdwg.mxu0
      %572 = vmatprep.subr.mxu0 %v408
      %573 = vmatpush1.msra.mxu0 %v406
      %574 = vmatprep.subr.mxu0 0.0
      %575 = vmatpush1.msra.mxu0 0.0
      %576 = vmatprep.subr.mxu0 0.0
      %577 = vmatpush1.msra.mxu0 0.0
      %578 = vmatprep.subr.mxu0 0.0
      %579 = vmatpush1.msra.mxu0 0.0
      %580 = vmatprep.subr.mxu0 0.0
      %581 = vmatpush1.msra.mxu0 0.0
      %582 = vmatprep.subr.mxu0 0.0
      %583 = vmatpush1.msra.mxu0 0.0
      %584 = vmatprep.subr.mxu0 0.0
      %585 = vmatpush1.msra.mxu0 0.0
      %586 = vmatprep.subr.mxu0 0.0
      %587 = vmatpush1.msra.mxu0 0.0
      %588 = vmatprep.subr.mxu0 0.0
      %589 = vmatpush1.msra.mxu0 0.0
      %590 = vmatprep.subr.mxu0 0.0
      %591 = vmatpush1.msra.mxu0 0.0
      %592 = vmatprep.subr.mxu0 0.0
      %593 = vmatpush1.msra.mxu0 0.0
      %594 = vmatprep.subr.mxu0 0.0
      %595 = vmatpush1.msra.mxu0 0.0
      %596 = vmatprep.subr.mxu0 0.0
      %597 = vmatpush1.msra.mxu0 0.0
      %598 = vmatprep.subr.mxu0 0.0
      %599 = vmatpush1.msra.mxu0 0.0
      %600 = vmatprep.subr.mxu0 0.0
      %601 = vmatpush1.msra.mxu0 0.0
      %602 = vmatprep.subr.mxu0 0.0
      %603 = vmatpush1.msra.mxu0 0.0
      %604 = vmatprep.subr.mxu0 0.0
      %605 = vmatpush1.msra.mxu0 0.0
      %606 = vmatprep.subr.mxu0 0.0
      %607 = vmatpush1.msra.mxu0 0.0
      %608 = vmatprep.subr.mxu0 0.0
      %609 = vmatpush1.msra.mxu0 0.0
      %610 = vmatprep.subr.mxu0 0.0
      %611 = vmatpush1.msra.mxu0 0.0
      %612 = vmatprep.subr.mxu0 0.0
      %613 = vmatpush1.msra.mxu0 0.0
      %614 = vmatprep.subr.mxu0 0.0
      %615 = vmatpush1.msra.mxu0 0.0
      %616 = vmatprep.subr.mxu0 0.0
      %617 = vmatpush1.msra.mxu0 0.0
      %618 = vmatprep.subr.mxu0 0.0
      %619 = vmatpush1.msra.mxu0 0.0
      %620 = vmatprep.subr.mxu0 0.0
      %621 = vmatpush1.msra.mxu0 0.0
      %622 = vmatprep.subr.mxu0 0.0
      %623 = vmatpush1.msra.mxu0 0.0
      %624 = vmatprep.subr.mxu0 0.0
      %625 = vmatpush1.msra.mxu0 0.0
      %626 = vmatprep.subr.mxu0 0.0
      %627 = vmatpush1.msra.mxu0 0.0
      %628 = vmatprep.subr.mxu0 0.0
      %629 = vmatpush1.msra.mxu0 0.0
      %630 = vmatprep.subr.mxu0 0.0
      %631 = vmatpush1.msra.mxu0 0.0
      %632 = vmatprep.subr.mxu0 0.0
      %633 = vmatpush1.msra.mxu0 0.0
      %634 = vmatprep.subr.mxu0 0.0
      %635 = vmatpush1.msra.mxu0 0.0
      %636 = vmatprep.mubr.f32.mxu0 0.0
      %637 = vmatmul.mubr.f32.gmra.mrb[0].mxu0 %v395
      %v638 = vpop.f32.mrb[0].mxu0
      %v639 = vadd.f32 %v347, %v638
      %v640 = vpop.f32.mrb[0].mxu0
      %v641 = vadd.f32 %v379, %v640
      %642 = vdwg.mxu0
      %643 = vmatprep.subr.mxu0 %v412
      %644 = vmatpush1.msra.mxu0 %v410
      %645 = vmatprep.subr.mxu0 0.0
      %646 = vmatpush1.msra.mxu0 0.0
      %647 = vmatprep.subr.mxu0 0.0
      %648 = vmatpush1.msra.mxu0 0.0
      %649 = vmatprep.subr.mxu0 0.0
      %650 = vmatpush1.msra.mxu0 0.0
      %651 = vmatprep.subr.mxu0 0.0
      %652 = vmatpush1.msra.mxu0 0.0
      %653 = vmatprep.subr.mxu0 0.0
      %654 = vmatpush1.msra.mxu0 0.0
      %655 = vmatprep.subr.mxu0 0.0
      %656 = vmatpush1.msra.mxu0 0.0
      %657 = vmatprep.subr.mxu0 0.0
      %658 = vmatpush1.msra.mxu0 0.0
      %659 = vmatprep.subr.mxu0 0.0
      %660 = vmatpush1.msra.mxu0 0.0
      %661 = vmatprep.subr.mxu0 0.0
      %662 = vmatpush1.msra.mxu0 0.0
      %663 = vmatprep.subr.mxu0 0.0
      %664 = vmatpush1.msra.mxu0 0.0
      %665 = vmatprep.subr.mxu0 0.0
      %666 = vmatpush1.msra.mxu0 0.0
      %667 = vmatprep.subr.mxu0 0.0
      %668 = vmatpush1.msra.mxu0 0.0
      %669 = vmatprep.subr.mxu0 0.0
      %670 = vmatpush1.msra.mxu0 0.0
      %671 = vmatprep.subr.mxu0 0.0
      %672 = vmatpush1.msra.mxu0 0.0
      %673 = vmatprep.subr.mxu0 0.0
      %674 = vmatpush1.msra.mxu0 0.0
      %675 = vmatprep.subr.mxu0 0.0
      %676 = vmatpush1.msra.mxu0 0.0
      %677 = vmatprep.subr.mxu0 0.0
      %678 = vmatpush1.msra.mxu0 0.0
      %679 = vmatprep.subr.mxu0 0.0
      %680 = vmatpush1.msra.mxu0 0.0
      %681 = vmatprep.subr.mxu0 0.0
      %682 = vmatpush1.msra.mxu0 0.0
      %683 = vmatprep.subr.mxu0 0.0
      %684 = vmatpush1.msra.mxu0 0.0
      %685 = vmatprep.subr.mxu0 0.0
      %686 = vmatpush1.msra.mxu0 0.0
      %687 = vmatprep.subr.mxu0 0.0
      %688 = vmatpush1.msra.mxu0 0.0
      %689 = vmatprep.subr.mxu0 0.0
      %690 = vmatpush1.msra.mxu0 0.0
      %691 = vmatprep.subr.mxu0 0.0
      %692 = vmatpush1.msra.mxu0 0.0
      %693 = vmatprep.subr.mxu0 0.0
      %694 = vmatpush1.msra.mxu0 0.0
      %695 = vmatprep.subr.mxu0 0.0
      %696 = vmatpush1.msra.mxu0 0.0
      %697 = vmatprep.subr.mxu0 0.0
      %698 = vmatpush1.msra.mxu0 0.0
      %699 = vmatprep.subr.mxu0 0.0
      %700 = vmatpush1.msra.mxu0 0.0
      %701 = vmatprep.subr.mxu0 0.0
      %702 = vmatpush1.msra.mxu0 0.0
      %703 = vmatprep.subr.mxu0 0.0
      %704 = vmatpush1.msra.mxu0 0.0
      %705 = vmatprep.subr.mxu0 0.0
      %706 = vmatpush1.msra.mxu0 0.0
      %707 = vmatprep.mubr.f32.mxu0 0.0
      %708 = vmatmul.mubr.f32.gmra.mrb[0].mxu0 %v395
      %v709 = vpop.f32.mrb[0].mxu0
      %v710 = vadd.f32 %v348, %v709
      %v711 = vpop.f32.mrb[0].mxu0
      %v712 = vadd.f32 %v380, %v711
      %713 = vdwg.mxu0
      %714 = vmatprep.subr.mxu0 %v416
      %715 = vmatpush1.msra.mxu0 %v414
      %716 = vmatprep.subr.mxu0 0.0
      %717 = vmatpush1.msra.mxu0 0.0
      %718 = vmatprep.subr.mxu0 0.0
      %719 = vmatpush1.msra.mxu0 0.0
      %720 = vmatprep.subr.mxu0 0.0
      %721 = vmatpush1.msra.mxu0 0.0
      %722 = vmatprep.subr.mxu0 0.0
      %723 = vmatpush1.msra.mxu0 0.0
      %724 = vmatprep.subr.mxu0 0.0
      %725 = vmatpush1.msra.mxu0 0.0
      %726 = vmatprep.subr.mxu0 0.0
      %727 = vmatpush1.msra.mxu0 0.0
      %728 = vmatprep.subr.mxu0 0.0
      %729 = vmatpush1.msra.mxu0 0.0
      %730 = vmatprep.subr.mxu0 0.0
      %731 = vmatpush1.msra.mxu0 0.0
      %732 = vmatprep.subr.mxu0 0.0
      %733 = vmatpush1.msra.mxu0 0.0
      %734 = vmatprep.subr.mxu0 0.0
      %735 = vmatpush1.msra.mxu0 0.0
      %736 = vmatprep.subr.mxu0 0.0
      %737 = vmatpush1.msra.mxu0 0.0
      %738 = vmatprep.subr.mxu0 0.0
      %739 = vmatpush1.msra.mxu0 0.0
      %740 = vmatprep.subr.mxu0 0.0
      %741 = vmatpush1.msra.mxu0 0.0
      %742 = vmatprep.subr.mxu0 0.0
      %743 = vmatpush1.msra.mxu0 0.0
      %744 = vmatprep.subr.mxu0 0.0
      %745 = vmatpush1.msra.mxu0 0.0
      %746 = vmatprep.subr.mxu0 0.0
      %747 = vmatpush1.msra.mxu0 0.0
      %748 = vmatprep.subr.mxu0 0.0
      %749 = vmatpush1.msra.mxu0 0.0
      %750 = vmatprep.subr.mxu0 0.0
      %751 = vmatpush1.msra.mxu0 0.0
      %752 = vmatprep.subr.mxu0 0.0
      %753 = vmatpush1.msra.mxu0 0.0
      %754 = vmatprep.subr.mxu0 0.0
      %755 = vmatpush1.msra.mxu0 0.0
      %756 = vmatprep.subr.mxu0 0.0
      %757 = vmatpush1.msra.mxu0 0.0
      %758 = vmatprep.subr.mxu0 0.0
      %759 = vmatpush1.msra.mxu0 0.0
      %760 = vmatprep.subr.mxu0 0.0
      %761 = vmatpush1.msra.mxu0 0.0
      %762 = vmatprep.subr.mxu0 0.0
      %763 = vmatpush1.msra.mxu0 0.0
      %764 = vmatprep.subr.mxu0 0.0
      %765 = vmatpush1.msra.mxu0 0.0
      %766 = vmatprep.subr.mxu0 0.0
      %767 = vmatpush1.msra.mxu0 0.0
      %768 = vmatprep.subr.mxu0 0.0
      %769 = vmatpush1.msra.mxu0 0.0
      %770 = vmatprep.subr.mxu0 0.0
      %771 = vmatpush1.msra.mxu0 0.0
      %772 = vmatprep.subr.mxu0 0.0
      %773 = vmatpush1.msra.mxu0 0.0
      %774 = vmatprep.subr.mxu0 0.0
      %775 = vmatpush1.msra.mxu0 0.0
      %776 = vmatprep.subr.mxu0 0.0
      %777 = vmatpush1.msra.mxu0 0.0
      %778 = vmatprep.mubr.f32.mxu0 0.0
      %779 = vmatmul.mubr.f32.gmra.mrb[0].mxu0 %v395
      %v780 = vpop.f32.mrb[0].mxu0
      %v781 = vadd.f32 %v349, %v780
      %v782 = vpop.f32.mrb[0].mxu0
      %v783 = vadd.f32 %v381, %v782
      %784 = vdwg.mxu0
      %785 = vmatprep.subr.mxu0 %v420
      %786 = vmatpush1.msra.mxu0 %v418
      %787 = vmatprep.subr.mxu0 0.0
      %788 = vmatpush1.msra.mxu0 0.0
      %789 = vmatprep.subr.mxu0 0.0
      %790 = vmatpush1.msra.mxu0 0.0
      %791 = vmatprep.subr.mxu0 0.0
      %792 = vmatpush1.msra.mxu0 0.0
      %793 = vmatprep.subr.mxu0 0.0
      %794 = vmatpush1.msra.mxu0 0.0
      %795 = vmatprep.subr.mxu0 0.0
      %796 = vmatpush1.msra.mxu0 0.0
      %797 = vmatprep.subr.mxu0 0.0
      %798 = vmatpush1.msra.mxu0 0.0
      %799 = vmatprep.subr.mxu0 0.0
      %800 = vmatpush1.msra.mxu0 0.0
      %801 = vmatprep.subr.mxu0 0.0
      %802 = vmatpush1.msra.mxu0 0.0
      %803 = vmatprep.subr.mxu0 0.0
      %804 = vmatpush1.msra.mxu0 0.0
      %805 = vmatprep.subr.mxu0 0.0
      %806 = vmatpush1.msra.mxu0 0.0
      %807 = vmatprep.subr.mxu0 0.0
      %808 = vmatpush1.msra.mxu0 0.0
      %809 = vmatprep.subr.mxu0 0.0
      %810 = vmatpush1.msra.mxu0 0.0
      %811 = vmatprep.subr.mxu0 0.0
      %812 = vmatpush1.msra.mxu0 0.0
      %813 = vmatprep.subr.mxu0 0.0
      %814 = vmatpush1.msra.mxu0 0.0
      %815 = vmatprep.subr.mxu0 0.0
      %816 = vmatpush1.msra.mxu0 0.0
      %817 = vmatprep.subr.mxu0 0.0
      %818 = vmatpush1.msra.mxu0 0.0
      %819 = vmatprep.subr.mxu0 0.0
      %820 = vmatpush1.msra.mxu0 0.0
      %821 = vmatprep.subr.mxu0 0.0
      %822 = vmatpush1.msra.mxu0 0.0
      %823 = vmatprep.subr.mxu0 0.0
      %824 = vmatpush1.msra.mxu0 0.0
      %825 = vmatprep.subr.mxu0 0.0
      %826 = vmatpush1.msra.mxu0 0.0
      %827 = vmatprep.subr.mxu0 0.0
      %828 = vmatpush1.msra.mxu0 0.0
      %829 = vmatprep.subr.mxu0 0.0
      %830 = vmatpush1.msra.mxu0 0.0
      %831 = vmatprep.subr.mxu0 0.0
      %832 = vmatpush1.msra.mxu0 0.0
      %833 = vmatprep.subr.mxu0 0.0
      %834 = vmatpush1.msra.mxu0 0.0
      %835 = vmatprep.subr.mxu0 0.0
      %836 = vmatpush1.msra.mxu0 0.0
      %837 = vmatprep.subr.mxu0 0.0
      %838 = vmatpush1.msra.mxu0 0.0
      %839 = vmatprep.subr.mxu0 0.0
      %840 = vmatpush1.msra.mxu0 0.0
      %841 = vmatprep.subr.mxu0 0.0
      %842 = vmatpush1.msra.mxu0 0.0
      %843 = vmatprep.subr.mxu0 0.0
      %844 = vmatpush1.msra.mxu0 0.0
      %845 = vmatprep.subr.mxu0 0.0
      %846 = vmatpush1.msra.mxu0 0.0
      %847 = vmatprep.subr.mxu0 0.0
      %848 = vmatpush1.msra.mxu0 0.0
      %849 = vmatprep.mubr.f32.mxu0 0.0
      %850 = vmatmul.mubr.f32.gmra.mrb[0].mxu0 %v395
      %v851 = vpop.f32.mrb[0].mxu0
      %v852 = vadd.f32 %v350, %v851
      %v853 = vpop.f32.mrb[0].mxu0
      %v854 = vadd.f32 %v382, %v853
      %855 = vdwg.mxu0
      %856 = vmatprep.subr.mxu0 %v424
      %857 = vmatpush1.msra.mxu0 %v422
      %858 = vmatprep.subr.mxu0 0.0
      %859 = vmatpush1.msra.mxu0 0.0
      %860 = vmatprep.subr.mxu0 0.0
      %861 = vmatpush1.msra.mxu0 0.0
      %862 = vmatprep.subr.mxu0 0.0
      %863 = vmatpush1.msra.mxu0 0.0
      %864 = vmatprep.subr.mxu0 0.0
      %865 = vmatpush1.msra.mxu0 0.0
      %866 = vmatprep.subr.mxu0 0.0
      %867 = vmatpush1.msra.mxu0 0.0
      %868 = vmatprep.subr.mxu0 0.0
      %869 = vmatpush1.msra.mxu0 0.0
      %870 = vmatprep.subr.mxu0 0.0
      %871 = vmatpush1.msra.mxu0 0.0
      %872 = vmatprep.subr.mxu0 0.0
      %873 = vmatpush1.msra.mxu0 0.0
      %874 = vmatprep.subr.mxu0 0.0
      %875 = vmatpush1.msra.mxu0 0.0
      %876 = vmatprep.subr.mxu0 0.0
      %877 = vmatpush1.msra.mxu0 0.0
      %878 = vmatprep.subr.mxu0 0.0
      %879 = vmatpush1.msra.mxu0 0.0
      %880 = vmatprep.subr.mxu0 0.0
      %881 = vmatpush1.msra.mxu0 0.0
      %882 = vmatprep.subr.mxu0 0.0
      %883 = vmatpush1.msra.mxu0 0.0
      %884 = vmatprep.subr.mxu0 0.0
      %885 = vmatpush1.msra.mxu0 0.0
      %886 = vmatprep.subr.mxu0 0.0
      %887 = vmatpush1.msra.mxu0 0.0
      %888 = vmatprep.subr.mxu0 0.0
      %889 = vmatpush1.msra.mxu0 0.0
      %890 = vmatprep.subr.mxu0 0.0
      %891 = vmatpush1.msra.mxu0 0.0
      %892 = vmatprep.subr.mxu0 0.0
      %893 = vmatpush1.msra.mxu0 0.0
      %894 = vmatprep.subr.mxu0 0.0
      %895 = vmatpush1.msra.mxu0 0.0
      %896 = vmatprep.subr.mxu0 0.0
      %897 = vmatpush1.msra.mxu0 0.0
      %898 = vmatprep.subr.mxu0 0.0
      %899 = vmatpush1.msra.mxu0 0.0
      %900 = vmatprep.subr.mxu0 0.0
      %901 = vmatpush1.msra.mxu0 0.0
      %902 = vmatprep.subr.mxu0 0.0
      %903 = vmatpush1.msra.mxu0 0.0
      %904 = vmatprep.subr.mxu0 0.0
      %905 = vmatpush1.msra.mxu0 0.0
      %906 = vmatprep.subr.mxu0 0.0
      %907 = vmatpush1.msra.mxu0 0.0
      %908 = vmatprep.subr.mxu0 0.0
      %909 = vmatpush1.msra.mxu0 0.0
      %910 = vmatprep.subr.mxu0 0.0
      %911 = vmatpush1.msra.mxu0 0.0
      %912 = vmatprep.subr.mxu0 0.0
      %913 = vmatpush1.msra.mxu0 0.0
      %914 = vmatprep.subr.mxu0 0.0
      %915 = vmatpush1.msra.mxu0 0.0
      %916 = vmatprep.subr.mxu0 0.0
      %917 = vmatpush1.msra.mxu0 0.0
      %918 = vmatprep.subr.mxu0 0.0
      %919 = vmatpush1.msra.mxu0 0.0
      %920 = vmatprep.mubr.f32.mxu0 0.0
      %921 = vmatmul.mubr.f32.gmra.mrb[0].mxu0 %v395
      %v922 = vpop.f32.mrb[0].mxu0
      %v923 = vadd.f32 %v351, %v922
      %v924 = vpop.f32.mrb[0].mxu0
      %v925 = vadd.f32 %v383, %v924
      %926 = vdwg.mxu0
      %927 = vmatprep.subr.mxu0 %v428
      %928 = vmatpush1.msra.mxu0 %v426
      %929 = vmatprep.subr.mxu0 0.0
      %930 = vmatpush1.msra.mxu0 0.0
      %931 = vmatprep.subr.mxu0 0.0
      %932 = vmatpush1.msra.mxu0 0.0
      %933 = vmatprep.subr.mxu0 0.0
      %934 = vmatpush1.msra.mxu0 0.0
      %935 = vmatprep.subr.mxu0 0.0
      %936 = vmatpush1.msra.mxu0 0.0
      %937 = vmatprep.subr.mxu0 0.0
      %938 = vmatpush1.msra.mxu0 0.0
      %939 = vmatprep.subr.mxu0 0.0
      %940 = vmatpush1.msra.mxu0 0.0
      %941 = vmatprep.subr.mxu0 0.0
      %942 = vmatpush1.msra.mxu0 0.0
      %943 = vmatprep.subr.mxu0 0.0
      %944 = vmatpush1.msra.mxu0 0.0
      %945 = vmatprep.subr.mxu0 0.0
      %946 = vmatpush1.msra.mxu0 0.0
      %947 = vmatprep.subr.mxu0 0.0
      %948 = vmatpush1.msra.mxu0 0.0
      %949 = vmatprep.subr.mxu0 0.0
      %950 = vmatpush1.msra.mxu0 0.0
      %951 = vmatprep.subr.mxu0 0.0
      %952 = vmatpush1.msra.mxu0 0.0
      %953 = vmatprep.subr.mxu0 0.0
      %954 = vmatpush1.msra.mxu0 0.0
      %955 = vmatprep.subr.mxu0 0.0
      %956 = vmatpush1.msra.mxu0 0.0
      %957 = vmatprep.subr.mxu0 0.0
      %958 = vmatpush1.msra.mxu0 0.0
      %959 = vmatprep.subr.mxu0 0.0
      %960 = vmatpush1.msra.mxu0 0.0
      %961 = vmatprep.subr.mxu0 0.0
      %962 = vmatpush1.msra.mxu0 0.0
      %963 = vmatprep.subr.mxu0 0.0
      %964 = vmatpush1.msra.mxu0 0.0
      %965 = vmatprep.subr.mxu0 0.0
      %966 = vmatpush1.msra.mxu0 0.0
      %967 = vmatprep.subr.mxu0 0.0
      %968 = vmatpush1.msra.mxu0 0.0
      %969 = vmatprep.subr.mxu0 0.0
      %970 = vmatpush1.msra.mxu0 0.0
      %971 = vmatprep.subr.mxu0 0.0
      %972 = vmatpush1.msra.mxu0 0.0
      %973 = vmatprep.subr.mxu0 0.0
      %974 = vmatpush1.msra.mxu0 0.0
      %975 = vmatprep.subr.mxu0 0.0
      %976 = vmatpush1.msra.mxu0 0.0
      %977 = vmatprep.subr.mxu0 0.0
      %978 = vmatpush1.msra.mxu0 0.0
      %979 = vmatprep.subr.mxu0 0.0
      %980 = vmatpush1.msra.mxu0 0.0
      %981 = vmatprep.subr.mxu0 0.0
      %982 = vmatpush1.msra.mxu0 0.0
      %983 = vmatprep.subr.mxu0 0.0
      %984 = vmatpush1.msra.mxu0 0.0
      %985 = vmatprep.subr.mxu0 0.0
      %986 = vmatpush1.msra.mxu0 0.0
      %987 = vmatprep.subr.mxu0 0.0
      %988 = vmatpush1.msra.mxu0 0.0
      %989 = vmatprep.subr.mxu0 0.0
      %990 = vmatpush1.msra.mxu0 0.0
      %991 = vmatprep.mubr.f32.mxu0 0.0
      %992 = vmatmul.mubr.f32.gmra.mrb[0].mxu0 %v395
      %v993 = vpop.f32.mrb[0].mxu0
      %v994 = vadd.f32 %v352, %v993
      %v995 = vpop.f32.mrb[0].mxu0
      %v996 = vadd.f32 %v384, %v995
      %997 = vdwg.mxu0
      %v998 = vld [vmem:[%s324] sm:$0xff]
      %v999 = vld [vmem:[%s324 + $0x8] sm:$0xff]
      %v1000 = vld [vmem:[%s324 + $0x10] sm:$0xff]
      %v1001 = vld [vmem:[%s324 + $0x18] sm:$0xff]
      %v1002 = vld [vmem:[%s324 + $0x20] sm:$0xff]
      %v1003 = vld [vmem:[%s324 + $0x28] sm:$0xff]
      %v1004 = vld [vmem:[%s324 + $0x30] sm:$0xff]
      %v1005 = vld [vmem:[%s324 + $0x38] sm:$0xff]
      %v1014 = vcombine.high %v998, %v998
      %v1015 = vcombine.high %v999, %v999
      %v1016 = vcombine.high %v1000, %v1000
      %v1017 = vcombine.high %v1001, %v1001
      %v1018 = vcombine.high %v1002, %v1002
      %v1019 = vcombine.high %v1003, %v1003
      %v1020 = vcombine.high %v1004, %v1004
      %v1021 = vcombine.high %v1005, %v1005
      %v1030 = vadd.f32 %v497, %v998
      %v1031 = vadd.f32 %v499, %v1014
      %v1032 = vadd.f32 %v568, %v999
      %v1033 = vadd.f32 %v570, %v1015
      %v1034 = vadd.f32 %v639, %v1000
      %v1035 = vadd.f32 %v641, %v1016
      %v1036 = vadd.f32 %v710, %v1001
      %v1037 = vadd.f32 %v712, %v1017
      %v1038 = vadd.f32 %v781, %v1002
      %v1039 = vadd.f32 %v783, %v1018
      %v1040 = vadd.f32 %v852, %v1003
      %v1041 = vadd.f32 %v854, %v1019
      %v1042 = vadd.f32 %v923, %v1004
      %v1043 = vadd.f32 %v925, %v1020
      %v1044 = vadd.f32 %v994, %v1005
      %v1045 = vadd.f32 %v996, %v1021
      %v1046 = vld [vmem:[%s4] sm:$0xf]
      %1048 = vset.pattern.permute.xlu0 0
      %1049 = vperm.xlu0 %1048, %v1046
      %v1050 = vpop.permute.xlu0 %1049
      %v1052 = vadd.f32 %v1030, %v1050
      %v1053 = vadd.f32 %v1031, %v1050
      %v1054 = vadd.f32 %v1032, %v1050
      %v1055 = vadd.f32 %v1033, %v1050
      %v1056 = vadd.f32 %v1034, %v1050
      %v1057 = vadd.f32 %v1035, %v1050
      %v1058 = vadd.f32 %v1036, %v1050
      %v1059 = vadd.f32 %v1037, %v1050
      %v1060 = vadd.f32 %v1038, %v1050
      %v1061 = vadd.f32 %v1039, %v1050
      %v1062 = vadd.f32 %v1040, %v1050
      %v1063 = vadd.f32 %v1041, %v1050
      %v1064 = vadd.f32 %v1042, %v1050
      %v1065 = vadd.f32 %v1043, %v1050
      %v1066 = vadd.f32 %v1044, %v1050
      %v1067 = vadd.f32 %v1045, %v1050
      %v1068 = vmax.f32 %v1052, 0.0
      %v1069 = vmax.f32 %v1053, 0.0
      %v1070 = vmax.f32 %v1054, 0.0
      %v1071 = vmax.f32 %v1055, 0.0
      %v1072 = vmax.f32 %v1056, 0.0
      %v1073 = vmax.f32 %v1057, 0.0
      %v1074 = vmax.f32 %v1058, 0.0
      %v1075 = vmax.f32 %v1059, 0.0
      %v1076 = vmax.f32 %v1060, 0.0
      %v1077 = vmax.f32 %v1061, 0.0
      %v1078 = vmax.f32 %v1062, 0.0
      %v1079 = vmax.f32 %v1063, 0.0
      %v1080 = vmax.f32 %v1064, 0.0
      %v1081 = vmax.f32 %v1065, 0.0
      %v1082 = vmax.f32 %v1066, 0.0
      %v1083 = vmax.f32 %v1067, 0.0
      %v1100 = vcombine.low %v1068, %v1069
      %v1101 = vcombine.low %v1070, %v1071
      %v1102 = vcombine.low %v1072, %v1073
      %v1103 = vcombine.low %v1074, %v1075
      %v1104 = vcombine.low %v1076, %v1077
      %v1105 = vcombine.low %v1078, %v1079
      %v1106 = vcombine.low %v1080, %v1081
      %v1107 = vcombine.low %v1082, %v1083
      %1116 = vst [vmem:[%s334] sm:$0xff] %v1100
      %1117 = vst [vmem:[%s334 + $0x8] sm:$0xff] %v1101
      %1118 = vst [vmem:[%s334 + $0x10] sm:$0xff] %v1102
      %1119 = vst [vmem:[%s334 + $0x18] sm:$0xff] %v1103
      %1120 = vst [vmem:[%s334 + $0x20] sm:$0xff] %v1104
      %1121 = vst [vmem:[%s334 + $0x28] sm:$0xff] %v1105
      %1122 = vst [vmem:[%s334 + $0x30] sm:$0xff] %v1106
      %1123 = vst [vmem:[%s334 + $0x38] sm:$0xff] %v1107
      %s1124 = smul.u32 16, %s21
      %p1125 = scmp.lt.s32.totalorder %s20, 1
      %s1126 = scalar_select %p1125, %s20, 1
      %p1127 = scmp.lt.s32.totalorder %s1124, 15
      %s1128 = scalar_select %p1127, %s1124, 15
      %s1129 = smul.addr %s1126, 16
      %s1130 = sadd.s32 %s1128, %s1129
      %s1131 = smul.addr %s1130, 4
      %s1132 = scalar_lea.vmem %s5, %s1131
      // Predicated region
      $region41: #{lss_fpn3d_forward.1} parent=39 // pred_check
        %p1133 = pneg %p174
      $region42: #{lss_fpn3d_forward.1} parent=39 // pred_check_branch
        %1135 = sbr.rel (%p1133) target = $region44
      $region43: #{lss_fpn3d_forward.1} parent=39 // pred_region
        %s1136 = smul.u32 16, %s21
      $region44: #{lss_fpn3d_forward.1} parent=39 // pred_fallthru
        _
    $region40: #{lss_fpn3d_forward.1} parent=5 // pred_fallthru
      _
    %p1137 = scmp.le.s32.totalorder 2, %s11
    // Predicated region
    $region45: #{lss_fpn3d_forward.1} parent=5 // pred_check
      %p1138 = pneg %p1137
    $region46: #{lss_fpn3d_forward.1} parent=5 // pred_check_branch
      %1140 = sbr.rel (%p1138) target = $region48
    $region47: #{lss_fpn3d_forward.1} parent=5 // pred_region
      %s1141 = ssub.s32 %s11, 2
      // Predicated region
      $region49: #{lss_fpn3d_forward.1} parent=47 // pred_check
        %p1142 = pneg %p180
      $region50: #{lss_fpn3d_forward.1} parent=47 // pred_check_branch
        %1144 = sbr.rel (%p1142) target = $region52
      $region51: #{lss_fpn3d_forward.1} parent=47 // pred_region
        %s1145 = smul.u32 16, %s23
        %p1146 = scmp.lt.s32.totalorder %s22, 1
        %s1147 = scalar_select %p1146, %s22, 1
        %p1148 = scmp.lt.s32.totalorder %s1145, 15
        %s1149 = scalar_select %p1148, %s1145, 15
        %s1150 = smul.addr %s1147, 16
        %s1151 = sadd.s32 %s1149, %s1150
        %s1152 = smul.addr %s1151, 4
        %s1153 = scalar_lea.vmem %s5, %s1152
      $region52: #{lss_fpn3d_forward.1} parent=47 // pred_fallthru
        _
    $region48: #{lss_fpn3d_forward.1} parent=5 // pred_fallthru
      _
  $region6: #{lss_fpn3d_forward.1} parent=0 // loop_footer
    %s15 = sadd.s32 1, %s11
  $region7: #{lss_fpn3d_forward.1} parent=0 // loop_footer_branch
    %10 = sbr.rel target = $region3
  $region8: #{lss_fpn3d_forward.1} parent=0 // loop_exit
    _

</llo_original>
